<compile_context>
chip_gen: v5e
topology: v5e:2x2
jax: 0.10.0
libtpu: 0.0.40
codegen_flags: <defaults>
</compile_context>

<pallas_src>
import functools
import math

import numpy as np
import jax
import jax.numpy as jnp
from jax import lax
from jax.experimental import pallas as pl
from jax.experimental.pallas import tpu as pltpu


# ---------------------------------------------------------------------------
# Pallas kernels
# ---------------------------------------------------------------------------

def _upsample_conv_kernel(x_ref, u_ref, w_ref, b_ref, o_ref, xu_ref, *,
                          nb, c, l_up, ksize, compute_dtype):
    """One grid step = nb batch elements: fused nearest-upsample + Conv1d(k=5, pad=2).

    x_ref : (nb*C, L)            activations, ORIGINAL dtype (cast to bf16 in-kernel)
    u_ref : (L, L_up + 2*pad)    0/1 upsample matrix with conv zero-pad columns baked in
    w_ref : (C_out, K*C)         conv weight, taps stacked along the contraction dim
    b_ref : (C_out, 1)           conv bias (f32)
    o_ref : (nb, C_out, L_up)    output
    xu_ref: (nb*C, L_up + 2*pad) compute-dtype scratch (exact: result of a 0/1 matmul)
    """
    # ONE upsample matmul for the whole batch block (batched along MXU rows).
    xu_ref[...] = jnp.dot(
        x_ref[...].astype(compute_dtype), u_ref[...],
        preferred_element_type=jnp.float32).astype(xu_ref.dtype)
    xu = xu_ref[...]
    # The K tap shifts are static lane-offset slices of the padded signal; batch elements
    # are stacked along lanes so channel mixing is ONE (C_out, K*C) @ (K*C, nb*L_up) matmul.
    xstack = jnp.concatenate(
        [jnp.concatenate(
            [xu[i * c:(i + 1) * c, k:k + l_up] for i in range(nb)], axis=1)
         for k in range(ksize)], axis=0)                     # (K*C, nb*L_up)
    acc = jnp.dot(w_ref[...], xstack, preferred_element_type=jnp.float32)
    acc = acc + b_ref[...]                                   # single bias add per step
    for i in range(nb):                                      # static, unrolled
        o_ref[i] = acc[:, i * l_up:(i + 1) * l_up].astype(o_ref.dtype)


def _upsample_only_kernel(x_ref, u_ref, o_ref):
    """Batched nearest-upsample only (use_conv=False).

    x_ref: (nb*C, L), u_ref: (L, L_up) 0/1 selection, o_ref: (nb*C, L_up).
    precision=HIGHEST keeps f32 inputs bit-exact on the MXU (0/1 selection matrix).
    """
    # TODO(synk): for large L replace this O(L^2) selection matmul with per-phase strided
    # stores / length-tiled blocks (pure data movement, HBM-bandwidth bound).
    o_ref[...] = jnp.dot(
        x_ref[...], u_ref[...],
        precision=lax.Precision.HIGHEST,
        preferred_element_type=jnp.float32).astype(o_ref.dtype)


# ---------------------------------------------------------------------------
# Upsample selection matrices (plain numpy, static shapes)
# ---------------------------------------------------------------------------

def _nearest_upsample_matrix(length, factor, dtype):
    l_up = length * factor
    t = np.arange(l_up)
    u = (t[None, :] // factor == np.arange(length)[:, None]).astype(np.float32)
    return jnp.asarray(u, dtype=dtype)                      # (L, L_up)


def _padded_upsample_matrix(length, factor, pad, dtype):
    """(L, L_up + 2*pad) 0/1 matrix: nearest upsample with `pad` zero columns each side."""
    l_up = length * factor
    p = np.arange(l_up + 2 * pad)
    pos = p - pad
    valid = (pos >= 0) & (pos < l_up)
    src = np.where(valid, pos // factor, 0)
    u = ((src[None, :] == np.arange(length)[:, None]) & valid[None, :]).astype(np.float32)
    return jnp.asarray(u, dtype=dtype)                      # (L, L_up + 2*pad)


def _pick_batch_block(n, c, bytes_per_batch_elem, budget_bytes=8 << 20):
    """Batch elements per grid step.

    - (nb*C) must keep the flattened (nb*C, ...) blocks sublane-aligned (multiple of 8)
      unless the block covers the whole flattened array.
    - stay within a per-step VMEM budget for the pipelined blocks.
    - prefer >=2 grid steps so the parallel batch axis can still be sharded across v7x's
      two TensorCores (extra steps cost only ~0.35us each on single-TC v5e/v6e).
    """
    divisors = [d for d in range(1, n + 1) if n % d == 0]
    aligned = [d for d in divisors if (d * c) % 8 == 0 or d == n]
    fitting = [d for d in aligned if d * bytes_per_batch_elem <= budget_bytes]
    if not fitting:
        fitting = [min(aligned)]
    multi_step = [d for d in fitting if n // d >= 2]
    return max(multi_step) if multi_step else max(fitting)


# ---------------------------------------------------------------------------
# Module wrapper
# ---------------------------------------------------------------------------

class Upsample:
    """JAX/Pallas port of the PyTorch Upsample module (1-D, nearest, optional Conv1d)."""

    def __init__(self, channels, use_conv, out_channels=None, factor=4,
                 compute_dtype=jnp.bfloat16, key=None):
        self.channels = channels
        self.out_channels = out_channels or channels
        self.use_conv = use_conv
        self.factor = factor
        self.ksize = 5
        self.pad = 2
        self.compute_dtype = compute_dtype
        if use_conv:
            key = jax.random.PRNGKey(0) if key is None else key
            kw, kb = jax.random.split(key)
            fan_in = channels * self.ksize
            bound = 1.0 / math.sqrt(fan_in)   # mimic PyTorch Conv1d default init range
            self.weight = jax.random.uniform(
                kw, (self.out_channels, channels, self.ksize), jnp.float32, -bound, bound)
            self.bias = jax.random.uniform(
                kb, (self.out_channels,), jnp.float32, -bound, bound)

    def __call__(self, x):
        n, c, l = x.shape
        assert c == self.channels
        l_up = l * self.factor
        x_bytes = np.dtype(x.dtype).itemsize
        x2d = x.reshape(n * c, l)      # free metadata reshape; cast (if any) happens in-kernel

        if self.use_conv:
            cd = self.compute_dtype
            cd_b = np.dtype(cd).itemsize
            pad = self.pad
            l_pad = l_up + 2 * pad
            c_out = self.out_channels
            k = self.ksize

            per_b = c * l * x_bytes + c_out * l_up * x_bytes + c * l_pad * cd_b
            nb = _pick_batch_block(n, c, per_b)

            u = _padded_upsample_matrix(l, self.factor, pad, cd)          # (L, L_pad)
            # Taps stacked along the contraction dim: [co, k*C + c] = weight[co, c, k]
            w_stacked = jnp.transpose(self.weight, (0, 2, 1)).reshape(
                c_out, k * c).astype(cd)
            b2d = self.bias.reshape(c_out, 1).astype(jnp.float32)

            kernel = functools.partial(
                _upsample_conv_kernel, nb=nb, c=c, l_up=l_up, ksize=k, compute_dtype=cd)

            # Honest VMEM accounting: double-buffered pipelined/resident operands + scratch.
            # Clamped so it is generous on v5e/v6e (128 MiB physical) but the small-shape
            # floor stays well inside v7x's 64 MiB physical VMEM.
            const_bytes = l * l_pad * cd_b + c_out * k * c * cd_b + c_out * 4
            block_bytes = nb * (c * l * x_bytes + c_out * l_up * x_bytes)
            scratch_bytes = nb * c * l_pad * cd_b
            need = 2 * (block_bytes + const_bytes) + scratch_bytes
            vmem_limit = int(np.clip(need + (2 << 20), 32 << 20, 100 << 20))

            flops = 2 * n * c * l * l_pad + 2 * n * c_out * k * c * l_up
            bytes_accessed = (n * c * l * x_bytes + const_bytes
                              + n * c_out * l_up * x_bytes)

            # TODO(synk): for large L, add a length grid axis with a block-diagonal U tile
            # (halo of k-1) or switch to the polyphase/transposed-conv fold to keep U linear.
            return pl.pallas_call(
                kernel,
                out_shape=jax.ShapeDtypeStruct((n, c_out, l_up), x.dtype),
                grid_spec=pltpu.PrefetchScalarGridSpec(
                    num_scalar_prefetch=0,
                    grid=(n // nb,),
                    in_specs=[
                        pl.BlockSpec((nb * c, l), lambda b: (b, 0)),
                        pl.BlockSpec((l, l_pad), lambda b: (0, 0)),
                        pl.BlockSpec((c_out, k * c), lambda b: (0, 0)),
                        pl.BlockSpec((c_out, 1), lambda b: (0, 0)),
                    ],
                    out_specs=pl.BlockSpec((nb, c_out, l_up), lambda b: (b, 0, 0)),
                    scratch_shapes=[pltpu.VMEM((nb * c, l_pad), cd)],
                ),
                compiler_params=pltpu.CompilerParams(
                    dimension_semantics=("parallel",),
                    vmem_limit_bytes=vmem_limit),
                cost_estimate=pl.CostEstimate(
                    flops=flops, transcendentals=0, bytes_accessed=bytes_accessed),
            )(x2d, u, w_stacked, b2d)
        else:
            per_b = c * (l + l_up) * x_bytes
            nb = _pick_batch_block(n, c, per_b)
            u = _nearest_upsample_matrix(l, self.factor, x.dtype)         # (L, L_up)

            const_bytes = l * l_up * x_bytes
            block_bytes = nb * c * (l + l_up) * x_bytes
            need = 2 * (block_bytes + const_bytes)
            vmem_limit = int(np.clip(need + (2 << 20), 32 << 20, 100 << 20))

            flops = 2 * n * c * l * l_up
            bytes_accessed = (n * c * (l + l_up) + l * l_up) * x_bytes

            out2d = pl.pallas_call(
                _upsample_only_kernel,
                out_shape=jax.ShapeDtypeStruct((n * c, l_up), x.dtype),
                grid_spec=pltpu.PrefetchScalarGridSpec(
                    num_scalar_prefetch=0,
                    grid=(n // nb,),
                    in_specs=[
                        pl.BlockSpec((nb * c, l), lambda b: (b, 0)),
                        pl.BlockSpec((l, l_up), lambda b: (0, 0)),
                    ],
                    out_specs=pl.BlockSpec((nb * c, l_up), lambda b: (b, 0)),
                ),
                compiler_params=pltpu.CompilerParams(
                    dimension_semantics=("parallel",),
                    vmem_limit_bytes=vmem_limit),
                cost_estimate=pl.CostEstimate(
                    flops=flops, transcendentals=0, bytes_accessed=bytes_accessed),
            )(x2d, u)
            return out2d.reshape(n, c, l_up)


# ---------------------------------------------------------------------------
# Pure-JAX reference (for correctness check only)
# ---------------------------------------------------------------------------

def _ref_forward(x, module, operand_dtype=None):
    """f32 reference. If operand_dtype is given, x/weight are rounded to that dtype first
    (to mirror the kernel's bf16 MXU operands) and the math is still done in f32."""
    if operand_dtype is not None:
        x = x.astype(operand_dtype).astype(jnp.float32)
    x_up = jnp.repeat(x, module.factor, axis=-1)
    if not module.use_conv:
        return x_up
    w = module.weight
    if operand_dtype is not None:
        w = w.astype(operand_dtype).astype(jnp.float32)
    out = jax.lax.conv_general_dilated(
        x_up, w, window_strides=(1,), padding=[(module.pad, module.pad)],
        dimension_numbers=("NCH", "OIH", "NCH"),
        precision=jax.lax.Precision.HIGHEST)
    return out + module.bias[None, :, None]


if __name__ == "__main__":
    key = jax.random.PRNGKey(0)
    kx, kp = jax.random.split(key)

    N, C, L = 2, 4, 16
    x = jax.random.normal(kx, (N, C, L), jnp.float32)

    # use_conv=True path (bf16 MXU operands, f32 accumulation)
    mod_conv = Upsample(channels=C, use_conv=True, factor=4, key=kp)
    y = jax.block_until_ready(mod_conv(x))
    y_ref = _ref_forward(x, mod_conv, operand_dtype=jnp.bfloat16)
    assert y.shape == (N, C, L * 4), y.shape
    np.testing.assert_allclose(np.asarray(y), np.asarray(y_ref), rtol=1e-4, atol=1e-4)

    # use_conv=False path (pure nearest upsample; exact)
    mod_plain = Upsample(channels=C, use_conv=False, factor=4)
    y2 = jax.block_until_ready(mod_plain(x))
    y2_ref = _ref_forward(x, mod_plain)
    assert y2.shape == (N, C, L * 4), y2.shape
    np.testing.assert_allclose(np.asarray(y2), np.asarray(y2_ref), rtol=1e-6, atol=1e-6)

    print("KERNEL_OK")
</pallas_src>

<mosaic_0001>
module attributes {stable_mosaic.version = 11 : i64} {
  func.func @_upsample_conv_kernel(%arg0: i32, %arg1: memref<8x16xf32, #tpu.memory_space<vmem>>, %arg2: memref<16x68xbf16, #tpu.memory_space<vmem>>, %arg3: memref<4x20xbf16, #tpu.memory_space<vmem>>, %arg4: memref<4x1xf32, #tpu.memory_space<vmem>>, %arg5: memref<2x4x64xf32, #tpu.memory_space<vmem>>, %arg6: memref<8x68xbf16, #tpu.memory_space<vmem>>) attributes {dimension_semantics = [#tpu.dimension_semantics<parallel>], iteration_bounds = array<i64: 1>, scalar_prefetch = 0 : i64, scratch_operands = 1 : i64, tpu.core_type = #tpu.core_type<tc>, window_params = [{transform_indices = @transform_0, window_bounds = array<i64: 8, 16>}, {pipeline_mode = #tpu.pipeline_mode<synchronous>, transform_indices = @transform_1, window_bounds = array<i64: 16, 68>}, {pipeline_mode = #tpu.pipeline_mode<synchronous>, transform_indices = @transform_2, window_bounds = array<i64: 4, 20>}, {pipeline_mode = #tpu.pipeline_mode<synchronous>, transform_indices = @transform_3, window_bounds = array<i64: 4, 1>}, {transform_indices = @transform_4, window_bounds = array<i64: 2, 4, 64>}]} {
    %c0 = arith.constant 0 : index
    %c0_0 = arith.constant 0 : index
    %0 = vector.load %arg1[%c0, %c0_0] : memref<8x16xf32, #tpu.memory_space<vmem>>, vector<8x16xf32>
    %1 = arith.truncf %0 : vector<8x16xf32> to vector<8x16xbf16>
    %c0_1 = arith.constant 0 : index
    %c0_2 = arith.constant 0 : index
    %2 = vector.load %arg2[%c0_1, %c0_2] : memref<16x68xbf16, #tpu.memory_space<vmem>>, vector<16x68xbf16>
    %cst = arith.constant dense<0.000000e+00> : vector<8x68xf32>
    %3 = tpu.matmul %1, %2, %cst {dimension_numbers = #tpu.dot_dimension_numbers<[1], [0], [0], [1], [0, 0, 1, 1], [], []>} : vector<8x16xbf16>, vector<16x68xbf16>, vector<8x68xf32> -> vector<8x68xf32>
    %4 = arith.truncf %3 : vector<8x68xf32> to vector<8x68xbf16>
    %c0_3 = arith.constant 0 : index
    %c0_4 = arith.constant 0 : index
    %5 = vector.load %arg6[%c0_3, %c0_4] : memref<8x68xbf16, #tpu.memory_space<vmem>>, vector<8x68xbf16>
    tpu.vector_store %arg6[%c0_3, %c0_4], %4 {strides = array<i32>} : memref<8x68xbf16, #tpu.memory_space<vmem>>, vector<8x68xbf16>,
    %c0_5 = arith.constant 0 : index
    %c0_6 = arith.constant 0 : index
    %6 = vector.load %arg6[%c0_5, %c0_6] : memref<8x68xbf16, #tpu.memory_space<vmem>>, vector<8x68xbf16>
    %7 = vector.extract_strided_slice %6 {offsets = [0, 0], sizes = [4, 64], strides = [1, 1]} : vector<8x68xbf16> to vector<4x64xbf16>
    %8 = vector.extract_strided_slice %6 {offsets = [4, 0], sizes = [4, 64], strides = [1, 1]} : vector<8x68xbf16> to vector<4x64xbf16>
    %9 = tpu.concatenate %7, %8 in 1 : vector<4x64xbf16>, vector<4x64xbf16> -> vector<4x128xbf16>
    %10 = vector.extract_strided_slice %6 {offsets = [0, 1], sizes = [4, 64], strides = [1, 1]} : vector<8x68xbf16> to vector<4x64xbf16>
    %11 = vector.extract_strided_slice %6 {offsets = [4, 1], sizes = [4, 64], strides = [1, 1]} : vector<8x68xbf16> to vector<4x64xbf16>
    %12 = tpu.concatenate %10, %11 in 1 : vector<4x64xbf16>, vector<4x64xbf16> -> vector<4x128xbf16>
    %13 = vector.extract_strided_slice %6 {offsets = [0, 2], sizes = [4, 64], strides = [1, 1]} : vector<8x68xbf16> to vector<4x64xbf16>
    %14 = vector.extract_strided_slice %6 {offsets = [4, 2], sizes = [4, 64], strides = [1, 1]} : vector<8x68xbf16> to vector<4x64xbf16>
    %15 = tpu.concatenate %13, %14 in 1 : vector<4x64xbf16>, vector<4x64xbf16> -> vector<4x128xbf16>
    %16 = vector.extract_strided_slice %6 {offsets = [0, 3], sizes = [4, 64], strides = [1, 1]} : vector<8x68xbf16> to vector<4x64xbf16>
    %17 = vector.extract_strided_slice %6 {offsets = [4, 3], sizes = [4, 64], strides = [1, 1]} : vector<8x68xbf16> to vector<4x64xbf16>
    %18 = tpu.concatenate %16, %17 in 1 : vector<4x64xbf16>, vector<4x64xbf16> -> vector<4x128xbf16>
    %19 = vector.extract_strided_slice %6 {offsets = [0, 4], sizes = [4, 64], strides = [1, 1]} : vector<8x68xbf16> to vector<4x64xbf16>
    %20 = vector.extract_strided_slice %6 {offsets = [4, 4], sizes = [4, 64], strides = [1, 1]} : vector<8x68xbf16> to vector<4x64xbf16>
    %21 = tpu.concatenate %19, %20 in 1 : vector<4x64xbf16>, vector<4x64xbf16> -> vector<4x128xbf16>
    %22 = tpu.concatenate %9, %12, %15, %18, %21 in 0 : vector<4x128xbf16>, vector<4x128xbf16>, vector<4x128xbf16>, vector<4x128xbf16>, vector<4x128xbf16> -> vector<20x128xbf16>
    %c0_7 = arith.constant 0 : index
    %c0_8 = arith.constant 0 : index
    %23 = vector.load %arg3[%c0_7, %c0_8] : memref<4x20xbf16, #tpu.memory_space<vmem>>, vector<4x20xbf16>
    %cst_9 = arith.constant dense<0.000000e+00> : vector<4x128xf32>
    %24 = tpu.matmul %23, %22, %cst_9 {dimension_numbers = #tpu.dot_dimension_numbers<[1], [0], [0], [1], [0, 0, 1, 1], [], []>} : vector<4x20xbf16>, vector<20x128xbf16>, vector<4x128xf32> -> vector<4x128xf32>
    %c0_10 = arith.constant 0 : index
    %c0_11 = arith.constant 0 : index
    %25 = vector.load %arg4[%c0_10, %c0_11] : memref<4x1xf32, #tpu.memory_space<vmem>>, vector<4x1xf32>
    %26 = vector.broadcast %25 : vector<4x1xf32> to vector<4x128xf32>
    %27 = arith.addf %24, %26 : vector<4x128xf32>
    %28 = vector.extract_strided_slice %27 {offsets = [0, 0], sizes = [4, 64], strides = [1, 1]} : vector<4x128xf32> to vector<4x64xf32>
    %c0_12 = arith.constant 0 : index
    %c0_13 = arith.constant 0 : index
    %c0_14 = arith.constant 0 : index
    %29 = vector.load %arg5[%c0_12, %c0_13, %c0_14] : memref<2x4x64xf32, #tpu.memory_space<vmem>>, vector<1x4x64xf32>
    %30 = vector.shape_cast %29 : vector<1x4x64xf32> to vector<4x64xf32>
    %31 = vector.shape_cast %28 : vector<4x64xf32> to vector<1x4x64xf32>
    tpu.vector_store %arg5[%c0_12, %c0_13, %c0_14], %31 {strides = array<i32>} : memref<2x4x64xf32, #tpu.memory_space<vmem>>, vector<1x4x64xf32>,
    %32 = vector.extract_strided_slice %27 {offsets = [0, 64], sizes = [4, 64], strides = [1, 1]} : vector<4x128xf32> to vector<4x64xf32>
    %c1 = arith.constant 1 : index
    %c0_15 = arith.constant 0 : index
    %c0_16 = arith.constant 0 : index
    %33 = vector.load %arg5[%c1, %c0_15, %c0_16] : memref<2x4x64xf32, #tpu.memory_space<vmem>>, vector<1x4x64xf32>
    %34 = vector.shape_cast %33 : vector<1x4x64xf32> to vector<4x64xf32>
    %35 = vector.shape_cast %32 : vector<4x64xf32> to vector<1x4x64xf32>
    tpu.vector_store %arg5[%c1, %c0_15, %c0_16], %35 {strides = array<i32>} : memref<2x4x64xf32, #tpu.memory_space<vmem>>, vector<1x4x64xf32>,
    return
  }
  func.func @transform_0(%arg0: i32) -> (i32, i32) {
    %c0_i32 = arith.constant 0 : i32
    %c0_i32_0 = arith.constant 0 : i32
    return %arg0, %c0_i32 : i32, i32
  }
  func.func @transform_1(%arg0: i32) -> (i32, i32) {
    %c0_i32 = arith.constant 0 : i32
    %c0_i32_0 = arith.constant 0 : i32
    %c0_i32_1 = arith.constant 0 : i32
    return %c0_i32, %c0_i32_0 : i32, i32
  }
  func.func @transform_2(%arg0: i32) -> (i32, i32) {
    %c0_i32 = arith.constant 0 : i32
    %c0_i32_0 = arith.constant 0 : i32
    %c0_i32_1 = arith.constant 0 : i32
    return %c0_i32, %c0_i32_0 : i32, i32
  }
  func.func @transform_3(%arg0: i32) -> (i32, i32) {
    %c0_i32 = arith.constant 0 : i32
    %c0_i32_0 = arith.constant 0 : i32
    %c0_i32_1 = arith.constant 0 : i32
    return %c0_i32, %c0_i32_0 : i32, i32
  }
  func.func @transform_4(%arg0: i32) -> (i32, i32, i32) {
    %c0_i32 = arith.constant 0 : i32
    %c0_i32_0 = arith.constant 0 : i32
    %c0_i32_1 = arith.constant 0 : i32
    return %arg0, %c0_i32, %c0_i32_0 : i32, i32, i32
  }
}

</mosaic_0001>

<llo_original>
// kernel: tpu_custom_call.1
$region0: #{tpu_custom_call.1}
  #allocation0 [shape = 'u32[]', space=smem, size = 0x4, offset = 0x4, fixed_abs, tag = 'smem constant byte address 0x4 - core index']
  #allocation1 [shape = 'u32[72,128]{1,0:T(1,128)}', space=vmem, size = 0x9000, scoped, tag = 'internal scratch']
  #allocation2 [shape = 'bf16[8,68]{1,0:T(8,128)(2,1)}', space=vmem, size = 0x800, scoped, tag = 'scratch operand']
  %s0 = inlined_call_operand.hbm [shape: f32[8,16], index: 0, kind: input, shape index: {}]
  %s1 = inlined_call_operand.hbm [shape: bf16[16,68], index: 1, kind: input, shape index: {}]
  %s2 = inlined_call_operand.vmem [shape: bf16[4,20], index: 2, kind: input, shape index: {}]
  %s3 = inlined_call_operand.vmem [shape: f32[4,1], index: 3, kind: input, shape index: {}]
  %s4 = inlined_call_operand.hbm [shape: f32[2,4,64], index: 4, kind: output, shape index: {}]
  %s5 = sld [smem:[#allocation0]]
  $region34: #{tpu_custom_call.1} parent=0
    _
  %s7 = ssub.s32 1, %s5
  %s8 = scalar_select 0, %s7, %s5
  $region1: #{tpu_custom_call.1} parent=0
    #allocation3 [shape = 'u8[4096]{0}', space=vmem, size = 0x1000, scoped, tag = 'input window, operand 0, single buffered']
    #allocation4 [shape = 's32[1]{0}', space=sflag, size = 0x4, scoped, tag = 'scoped memory for tpu_custom_call.1']
    #allocation5 [shape = 's32[1]{0}', space=sflag, size = 0x4, scoped, tag = 'scoped memory for tpu_custom_call.1']
    #allocation6 [shape = 'u8[4096]{0}', space=vmem, size = 0x1000, scoped, tag = 'input window, operand 1, single buffered']
    #allocation7 [shape = 's32[1]{0}', space=sflag, size = 0x4, scoped, tag = 'scoped memory for tpu_custom_call.1']
    #allocation8 [shape = 'u8[4096]{0}', space=vmem, size = 0x1000, scoped, tag = 'output window, operand 0, single buffered']
    %9 = vsyncpa [#allocation4], 0
    %10 = vsyncpa [#allocation7], 0
    %11 = vsyncpa [#allocation5], 0
    // Predicated region
    $region2: #{tpu_custom_call.1} parent=1 // pred_check
      _
    $region3: #{tpu_custom_call.1} parent=1 // pred_check_branch
      %13 = sbr.rel (0) target = $region5
    $region4: #{tpu_custom_call.1} parent=1 // pred_region
      %15 = vsyncadd [#allocation4], 0
      %s17 = sshll.u32 %s0, 4
      %s18 = int_to_ptr.hbm [resolvable:$true] %s17
      %s19 = sshll.u32 [#allocation3], 4
      %s20 = int_to_ptr.vmem [resolvable:$true] %s19
      %22 = dma.hbm_to_vmem [thread:$0]  %s18, 128, %s20, [#allocation4]
    $region5: #{tpu_custom_call.1} parent=1 // pred_fallthru
      _
    // Predicated region
    $region6: #{tpu_custom_call.1} parent=1 // pred_check
      _
    $region7: #{tpu_custom_call.1} parent=1 // pred_check_branch
      %24 = sbr.rel (0) target = $region9
    $region8: #{tpu_custom_call.1} parent=1 // pred_region
      %26 = vsyncadd [#allocation7], 0
      %s27 = sshll.u32 %s1, 4
      %s28 = int_to_ptr.hbm [resolvable:$true] %s27
      %s29 = sshll.u32 [#allocation6], 4
      %s30 = int_to_ptr.vmem [resolvable:$true] %s29
      %35 = dma.hbm_to_vmem [thread:$0]  %s28, 128, %s30, [#allocation7], 64, 64, 4
    $region9: #{tpu_custom_call.1} parent=1 // pred_fallthru
      _
    // Predicated region
    $region10: #{tpu_custom_call.1} parent=1 // pred_check
      _
    $region11: #{tpu_custom_call.1} parent=1 // pred_check_branch
      %37 = sbr.rel (0) target = $region13
    $region12: #{tpu_custom_call.1} parent=1 // pred_region
      _
    $region13: #{tpu_custom_call.1} parent=1 // pred_fallthru
      _
    // Predicated region
    $region14: #{tpu_custom_call.1} parent=1 // pred_check
      _
    $region15: #{tpu_custom_call.1} parent=1 // pred_check_branch
      %39 = sbr.rel (0) target = $region17
    $region16: #{tpu_custom_call.1} parent=1 // pred_region
      _
    $region17: #{tpu_custom_call.1} parent=1 // pred_fallthru
      _
    // Predicated region
    $region18: #{tpu_custom_call.1} parent=1 // pred_check
      _
    $region19: #{tpu_custom_call.1} parent=1 // pred_check_branch
      %41 = sbr.rel (0) target = $region21
    $region20: #{tpu_custom_call.1} parent=1 // pred_region
      %43 = dma.done [#allocation4], 128
    $region21: #{tpu_custom_call.1} parent=1 // pred_fallthru
      _
    // Predicated region
    $region22: #{tpu_custom_call.1} parent=1 // pred_check
      _
    $region23: #{tpu_custom_call.1} parent=1 // pred_check_branch
      %45 = sbr.rel (0) target = $region25
    $region24: #{tpu_custom_call.1} parent=1 // pred_region
      %47 = dma.done [#allocation7], 128
    $region25: #{tpu_custom_call.1} parent=1 // pred_fallthru
      _
    %v49 = vld [vmem:[#allocation3] sm:$0xff]
    %v50 = vpack.c.bf16 %v49, %v49
    %v51 = vld [vmem:[#allocation6] sm:$0xf]
    %v52 = vld [vmem:[#allocation6 + $0x4] sm:$0xf]
    %v55 = vunpack.c.l.b16 %v51
    %v56 = vunpack.c.l.b16 %v52
    %v57 = vpack.c.b16 %v56, %v55
    %vm59 = vcmask 130048
    %v61 = vsel %vm59, %v50, 0
    %63 = vmatpush.bf16.msra.mxu0 0
    %64 = vmatpush.bf16.msra.mxu0 0
    %65 = vmatpush.bf16.msra.mxu0 0
    %66 = vmatpush.bf16.msra.mxu0 0
    %67 = vmatpush.bf16.msra.mxu0 0
    %68 = vmatpush.bf16.msra.mxu0 0
    %69 = vmatpush.bf16.msra.mxu0 0
    %70 = vmatpush.bf16.msra.mxu0 %v57
    %71 = vmatmul.bf16.gmra.mxu0 %v61
    %v72 = vpop.f32.mrf.mxu0
    %v73 = vadd.f32 0.0, %v72
    %v74 = vpop.f32.mrf.mxu0
    %75 = vdwg.mxu0
    %v76 = vpack.c.bf16 %v73, %v73
    %vm77 = vcmask 551936
    %78 = vst.msk [vmem:[#allocation2] sm:$0xf] %vm77, %v76
    %v79 = vld [vmem:[#allocation2] sm:$0xf]
    %v81 = vunpack.c.l.b16 %v79
    %v82 = vpack.c.b16 %v81, %v81
    %v83 = vrot.slane %v82, 2
    %84 = vrot.lane.b32.xlu0 %v83, 64
    %v85 = vpop.permute.xlu0 %84
    %vm86 = vcmask 523264
    %v89 = vsel %vm86, %v79, %v85
    %90 = vrot.lane.b32.xlu0 %v82, 127
    %v91 = vpop.permute.xlu0 %90
    %92 = vrot.lane.b32.xlu0 %v83, 63
    %v93 = vpop.permute.xlu0 %92
    %v96 = vsel %vm86, %v91, %v93
    %97 = vrot.lane.b32.xlu0 %v82, 126
    %v98 = vpop.permute.xlu0 %97
    %99 = vrot.lane.b32.xlu0 %v83, 62
    %v100 = vpop.permute.xlu0 %99
    %v103 = vsel %vm86, %v98, %v100
    %104 = vrot.lane.b32.xlu0 %v82, 125
    %v105 = vpop.permute.xlu0 %104
    %106 = vrot.lane.b32.xlu0 %v83, 61
    %v107 = vpop.permute.xlu0 %106
    %v110 = vsel %vm86, %v105, %v107
    %111 = vrot.lane.b32.xlu0 %v82, 124
    %v112 = vpop.permute.xlu0 %111
    %113 = vrot.lane.b32.xlu0 %v83, 60
    %v114 = vpop.permute.xlu0 %113
    %v117 = vsel %vm86, %v112, %v114
    %v119 = vrot.slane %v96, 6
    %v121 = vrot.slane %v103, 4
    %v123 = vrot.slane %v110, 2
    %vm124 = vcmask 1041408
    %v126 = vsel %vm124, %v89, %v119
    %vm127 = vcmask 1043456
    %v129 = vsel %vm127, %v126, %v121
    %vm130 = vcmask 1045504
    %v132 = vsel %vm130, %v129, %v123
    %v134 = vld [vmem:[%s2] sm:$0x3]
    %v135 = vld [vmem:[%s3] sm:$0xf]
    %137 = vset.pattern.permute.xlu0 0
    %138 = vperm.xlu0 %137, %v135
    %v139 = vpop.permute.xlu0 %138
    %vm141 = vcmask 162816
    %v143 = vsel %vm141, %v134, 0
    %v145 = vsel %vm124, %v117, 0
    %147 = vmatpush.bf16.msra.mxu0 0
    %148 = vmatpush.bf16.msra.mxu0 0
    %149 = vmatpush.bf16.msra.mxu0 0
    %150 = vmatpush.bf16.msra.mxu0 0
    %151 = vmatpush.bf16.msra.mxu0 0
    %152 = vmatpush.bf16.msra.mxu0 0
    %153 = vmatpush.bf16.msra.mxu0 %v145
    %154 = vmatpush.bf16.msra.mxu0 %v132
    %155 = vmatmul.bf16.gmra.mxu0 %v143
    %v156 = vpop.f32.mrf.mxu0
    %v157 = vadd.f32 %v139, %v156
    %v158 = vpop.f32.mrf.mxu0
    %159 = vdwg.mxu0
    %vm160 = vcmask 519168
    %161 = vst.msk [vmem:[#allocation8] sm:$0xf] %vm160, %v157
    %163 = vrot.lane.b32.xlu0 %v157, 64
    %v164 = vpop.permute.xlu0 %163
    %s166 = scalar_lea.vmem [#allocation8], 4
    %167 = vst.msk [vmem:[%s166] sm:$0xf] %vm160, %v164
    // Predicated region
    $region26: #{tpu_custom_call.1} parent=1 // pred_check
      _
    $region27: #{tpu_custom_call.1} parent=1 // pred_check_branch
      %169 = sbr.rel (0) target = $region29
    $region28: #{tpu_custom_call.1} parent=1 // pred_region
      %171 = vsyncadd [#allocation5], 0
      %s172 = sshll.u32 [#allocation8], 4
      %s173 = int_to_ptr.vmem [resolvable:$true] %s172
      %s174 = sshll.u32 %s4, 4
      %s175 = int_to_ptr.hbm [resolvable:$true] %s174
      %180 = dma.vmem_to_hbm [thread:$0]  %s173, 128, %s175, [#allocation5], 64, 64, 4
    $region29: #{tpu_custom_call.1} parent=1 // pred_fallthru
      _
    // Predicated region
    $region30: #{tpu_custom_call.1} parent=1 // pred_check
      _
    $region31: #{tpu_custom_call.1} parent=1 // pred_check_branch
      %182 = sbr.rel (0) target = $region33
    $region32: #{tpu_custom_call.1} parent=1 // pred_region
      %184 = dma.done [#allocation5], 128
    $region33: #{tpu_custom_call.1} parent=1 // pred_fallthru
      _
    %185 = vsyncpa [#allocation4], 1
    %186 = vsyncpa [#allocation7], 1
    %187 = vsyncpa [#allocation5], 1

</llo_original>
